<compile_context>
chip_gen: v7x
topology: tpu7x:2x2x1
jax: 0.10.0
libtpu: 0.0.40
codegen_flags: <defaults>
</compile_context>

<pallas_src>
import functools

import jax
import jax.numpy as jnp
from jax.experimental import pallas as pl
from jax.experimental.pallas import tpu as pltpu

KS = (3, 4, 5)            # the three conv kernel heights
KMAX = max(KS)            # 5
MAXPAD = KMAX - 1         # shared zero padding of (k-1) realised once with 4


def kimcnn_kernel(x_ref, w_ref, b_ref, o_ref, *, S, C):
    """x_ref: [TB, Spad, D] (compute dtype); w_ref: [KMAX*D, NPAD] (compute dtype);
    b_ref: [1, NPAD] f32; o_ref: [TB, NPAD] f32."""
    TB, Spad, D = x_ref.shape
    NPAD = o_ref.shape[-1]
    L = S + KMAX - 1                       # unified output length (= longest conv)

    # Single load of the padded activations; take the KMAX shifted windows from
    # the loaded value (no repeated overlapping Ref slices).
    x = x_ref[...]                                           # [TB, Spad, D]
    parts = [x[:, dh:dh + L, :] for dh in range(KMAX)]       # KMAX x [TB, L, D]
    a = jnp.concatenate(parts, axis=-1)                      # [TB, L, KMAX*D]
    a2 = a.reshape(TB * L, KMAX * D)                         # 2-D lhs for the MXU

    # One fused matmul: K = KMAX*D (160), N = NPAD (128), f32 accumulation.
    y = jnp.dot(a2, w_ref[...], preferred_element_type=jnp.float32)
    y = y.reshape(TB, L, NPAD)

    # Bias + ReLU on the f32 accumulator (bias broadcast hoisted, done once).
    y = jnp.maximum(y + b_ref[...].reshape(1, 1, NPAD), 0.0)

    # Per-conv valid-length mask: conv with kernel k only has S+k-1 valid rows.
    # ReLU output >= 0, so masking invalid rows to 0 never changes the max.
    lane = jax.lax.broadcasted_iota(jnp.int32, (TB, L, NPAD), 2)
    t = jax.lax.broadcasted_iota(jnp.int32, (TB, L, NPAD), 1)
    valid = jnp.where(lane < C, S + KS[0] - 1,
            jnp.where(lane < 2 * C, S + KS[1] - 1,
            jnp.where(lane < 3 * C, S + KS[2] - 1, 0)))
    y = jnp.where(t < valid, y, 0.0)

    # Max-over-time while still in vregs; single lane-dense store.
    o_ref[...] = jnp.max(y, axis=1).astype(o_ref.dtype)      # [TB, NPAD]


def kimcnn_forward(x_idx, embed_table, weights, biases, *,
                   compute_dtype=jnp.bfloat16, block_b=8):
    """x_idx: int32 [B, S]; embed_table: [V, D]; weights[i]: [k_i, C, D]; biases[i]: [C]."""
    emb = jnp.take(embed_table, x_idx, axis=0)               # [B, S, D] f32
    B, S, D = emb.shape
    C = weights[0].shape[1]
    NC = 3 * C
    NPAD = max(128, pl.cdiv(NC, 128) * 128)                  # lane-dense output width
    Spad = S + 2 * MAXPAD

    # Zero-padded activations in the compute dtype.
    xpad = jnp.pad(emb, ((0, 0), (MAXPAD, MAXPAD), (0, 0))).astype(compute_dtype)

    # Fused, pre-transposed weight [KMAX*D, NPAD] and fused bias [1, NPAD].
    # Conv with kernel k occupies taps (KMAX-k)..(KMAX-1) and channels idx*C..(idx+1)*C.
    w_fused = jnp.zeros((KMAX * D, NPAD), jnp.float32)
    b_fused = jnp.zeros((NPAD,), jnp.float32)
    for idx, (k, w, b) in enumerate(zip(KS, weights, biases)):
        w_dc = jnp.transpose(w, (0, 2, 1))                   # [k, D, C]
        off_tap = KMAX - k
        w_fused = w_fused.at[off_tap * D:(off_tap + k) * D,
                             idx * C:(idx + 1) * C].set(w_dc.reshape(k * D, C))
        b_fused = b_fused.at[idx * C:(idx + 1) * C].set(b)
    w_fused = w_fused.astype(compute_dtype)
    b_fused = b_fused.reshape(1, NPAD)                       # kept f32

    # Batch tiling: grid over B, batch axis marked parallel (megacore / v7x 2 TCs).
    TB = min(B, block_b)
    Bp = pl.cdiv(B, TB) * TB
    if Bp != B:
        xpad = jnp.pad(xpad, ((0, Bp - B), (0, 0), (0, 0)))

    kernel = functools.partial(kimcnn_kernel, S=S, C=C)

    out = pl.pallas_call(
        kernel,
        out_shape=jax.ShapeDtypeStruct((Bp, NPAD), jnp.float32),
        grid_spec=pltpu.PrefetchScalarGridSpec(
            num_scalar_prefetch=0,
            grid=(Bp // TB,),
            in_specs=[
                pl.BlockSpec((TB, Spad, D), lambda i: (i, 0, 0)),
                pl.BlockSpec((KMAX * D, NPAD), lambda i: (0, 0)),
                pl.BlockSpec((1, NPAD), lambda i: (0, 0)),
            ],
            out_specs=pl.BlockSpec((TB, NPAD), lambda i: (i, 0)),
        ),
        compiler_params=pltpu.CompilerParams(
            dimension_semantics=("parallel",)),
    )(xpad, w_fused, b_fused)

    return out[:B, :NC]                                      # strip lane/batch padding


def kimcnn_reference(x_idx, embed_table, weights, biases):
    """Pure-JAX reference mirroring the PyTorch forward (NCHW conv)."""
    emb = jnp.take(embed_table, x_idx, axis=0).astype(jnp.float32)   # [B, S, D]
    x4d = emb[:, None, :, :]                                         # [B, 1, S, D]
    pooled = []
    for (w_kcd, b), k in zip(zip(weights, biases), KS):
        w_oihw = jnp.transpose(w_kcd, (1, 0, 2))[:, None, :, :]      # [C, 1, k, D]
        y = jax.lax.conv_general_dilated(
            x4d, w_oihw, window_strides=(1, 1),
            padding=((k - 1, k - 1), (0, 0)),
            dimension_numbers=('NCHW', 'OIHW', 'NCHW'))              # [B, C, S+k-1, 1]
        y = y + b.reshape(1, -1, 1, 1)
        y = jnp.maximum(y, 0.0)[:, :, :, 0]                          # [B, C, S+k-1]
        pooled.append(jnp.max(y, axis=2))                            # [B, C]
    return jnp.concatenate(pooled, axis=1)                           # [B, 3C]


if __name__ == "__main__":
    # Small shapes consistent with the module's args.
    B, S = 2, 8            # batch, sequence length
    words_num = 100        # vocab size
    words_dim = 32         # embedding dim D
    output_channel = 16    # C

    key = jax.random.PRNGKey(0)
    k_emb, k_idx, k_w1, k_b1, k_w2, k_b2, k_w3, k_b3 = jax.random.split(key, 8)

    # Embedding: uniform(-0.25, 0.25) as in mode='rand'.
    embed_table = jax.random.uniform(
        k_emb, (words_num, words_dim), jnp.float32, minval=-0.25, maxval=0.25)
    x_idx = jax.random.randint(k_idx, (B, S), 0, words_num, dtype=jnp.int32)

    def init_w(k_rng, k):
        return 0.1 * jax.random.normal(k_rng, (k, output_channel, words_dim), jnp.float32)

    def init_b(k_rng):
        return 0.1 * jax.random.normal(k_rng, (output_channel,), jnp.float32)

    weights = (init_w(k_w1, 3), init_w(k_w2, 4), init_w(k_w3, 5))
    biases = (init_b(k_b1), init_b(k_b2), init_b(k_b3))

    ref = jax.block_until_ready(kimcnn_reference(x_idx, embed_table, weights, biases))

    # f32 path: exact check of the fused im2col formulation.
    out_f32 = jax.block_until_ready(
        kimcnn_forward(x_idx, embed_table, weights, biases, compute_dtype=jnp.float32))
    assert out_f32.shape == (B, 3 * output_channel)
    assert jnp.allclose(out_f32, ref, atol=1e-5, rtol=1e-5), "f32 mismatch vs reference"

    # bf16-input / f32-accumulate fast path (v6e/v7x): looser numerical tolerance.
    out_bf16 = jax.block_until_ready(
        kimcnn_forward(x_idx, embed_table, weights, biases, compute_dtype=jnp.bfloat16))
    assert out_bf16.shape == (B, 3 * output_channel)
    assert jnp.allclose(out_bf16, ref, atol=3e-2, rtol=3e-2), "bf16 mismatch vs reference"

    print("KERNEL_OK")
</pallas_src>

<mosaic_0001>
module attributes {stable_mosaic.version = 11 : i64} {
  func.func @kimcnn_kernel(%arg0: i32, %arg1: memref<2x16x32xf32, #tpu.memory_space<vmem>>, %arg2: memref<160x128xf32, #tpu.memory_space<vmem>>, %arg3: memref<1x128xf32, #tpu.memory_space<vmem>>, %arg4: memref<2x128xf32, #tpu.memory_space<vmem>>) attributes {dimension_semantics = [#tpu.dimension_semantics<parallel>], iteration_bounds = array<i64: 1>, scalar_prefetch = 0 : i64, scratch_operands = 0 : i64, tpu.core_type = #tpu.core_type<tc>, window_params = [{transform_indices = @transform_0, window_bounds = array<i64: 2, 16, 32>}, {pipeline_mode = #tpu.pipeline_mode<synchronous>, transform_indices = @transform_1, window_bounds = array<i64: 160, 128>}, {pipeline_mode = #tpu.pipeline_mode<synchronous>, transform_indices = @transform_2, window_bounds = array<i64: 1, 128>}, {transform_indices = @transform_3, window_bounds = array<i64: 2, 128>}]} {
    %c0 = arith.constant 0 : index
    %c0_0 = arith.constant 0 : index
    %c0_1 = arith.constant 0 : index
    %0 = vector.load %arg1[%c0, %c0_0, %c0_1] : memref<2x16x32xf32, #tpu.memory_space<vmem>>, vector<2x16x32xf32>
    %1 = vector.extract_strided_slice %0 {offsets = [0, 0, 0], sizes = [2, 12, 32], strides = [1, 1, 1]} : vector<2x16x32xf32> to vector<2x12x32xf32>
    %2 = vector.extract_strided_slice %0 {offsets = [0, 1, 0], sizes = [2, 12, 32], strides = [1, 1, 1]} : vector<2x16x32xf32> to vector<2x12x32xf32>
    %3 = vector.extract_strided_slice %0 {offsets = [0, 2, 0], sizes = [2, 12, 32], strides = [1, 1, 1]} : vector<2x16x32xf32> to vector<2x12x32xf32>
    %4 = vector.extract_strided_slice %0 {offsets = [0, 3, 0], sizes = [2, 12, 32], strides = [1, 1, 1]} : vector<2x16x32xf32> to vector<2x12x32xf32>
    %5 = vector.extract_strided_slice %0 {offsets = [0, 4, 0], sizes = [2, 12, 32], strides = [1, 1, 1]} : vector<2x16x32xf32> to vector<2x12x32xf32>
    %6 = tpu.concatenate %1, %2, %3, %4, %5 in 2 : vector<2x12x32xf32>, vector<2x12x32xf32>, vector<2x12x32xf32>, vector<2x12x32xf32>, vector<2x12x32xf32> -> vector<2x12x160xf32>
    %7 = vector.shape_cast %6 : vector<2x12x160xf32> to vector<24x160xf32>
    %c0_2 = arith.constant 0 : index
    %c0_3 = arith.constant 0 : index
    %8 = vector.load %arg2[%c0_2, %c0_3] : memref<160x128xf32, #tpu.memory_space<vmem>>, vector<160x128xf32>
    %cst = arith.constant dense<0.000000e+00> : vector<24x128xf32>
    %9 = tpu.matmul %7, %8, %cst {dimension_numbers = #tpu.dot_dimension_numbers<[1], [0], [0], [1], [0, 0, 1, 1], [], []>} : vector<24x160xf32>, vector<160x128xf32>, vector<24x128xf32> -> vector<24x128xf32>
    %10 = vector.shape_cast %9 : vector<24x128xf32> to vector<2x12x128xf32>
    %c0_4 = arith.constant 0 : index
    %c0_5 = arith.constant 0 : index
    %11 = vector.load %arg3[%c0_4, %c0_5] : memref<1x128xf32, #tpu.memory_space<vmem>>, vector<1x128xf32>
    %12 = vector.shape_cast %11 : vector<1x128xf32> to vector<1x1x128xf32>
    %13 = vector.broadcast %12 : vector<1x1x128xf32> to vector<2x12x128xf32>
    %14 = arith.addf %10, %13 : vector<2x12x128xf32>
    %cst_6 = arith.constant 0.000000e+00 : f32
    %15 = vector.broadcast %cst_6 : f32 to vector<2x12x128xf32>
    %16 = arith.maximumf %14, %15 : vector<2x12x128xf32>
    %17 = tpu.iota {dimensions = array<i32: 2>} : vector<2x12x128xi32>
    %18 = tpu.iota {dimensions = array<i32: 1>} : vector<2x12x128xi32>
    %c16_i32 = arith.constant 16 : i32
    %19 = vector.broadcast %c16_i32 : i32 to vector<2x12x128xi32>
    %20 = arith.cmpi slt, %17, %19 : vector<2x12x128xi32>
    %c32_i32 = arith.constant 32 : i32
    %21 = vector.broadcast %c32_i32 : i32 to vector<2x12x128xi32>
    %22 = arith.cmpi slt, %17, %21 : vector<2x12x128xi32>
    %c48_i32 = arith.constant 48 : i32
    %23 = vector.broadcast %c48_i32 : i32 to vector<2x12x128xi32>
    %24 = arith.cmpi slt, %17, %23 : vector<2x12x128xi32>
    %c12_i32 = arith.constant 12 : i32
    %c0_i32 = arith.constant 0 : i32
    %25 = vector.broadcast %c12_i32 : i32 to vector<2x12x128xi32>
    %26 = vector.broadcast %c0_i32 : i32 to vector<2x12x128xi32>
    %27 = arith.select %24, %25, %26 : vector<2x12x128xi1>, vector<2x12x128xi32>
    %c11_i32 = arith.constant 11 : i32
    %28 = vector.broadcast %c11_i32 : i32 to vector<2x12x128xi32>
    %29 = arith.select %22, %28, %27 : vector<2x12x128xi1>, vector<2x12x128xi32>
    %c10_i32 = arith.constant 10 : i32
    %30 = vector.broadcast %c10_i32 : i32 to vector<2x12x128xi32>
    %31 = arith.select %20, %30, %29 : vector<2x12x128xi1>, vector<2x12x128xi32>
    %32 = arith.cmpi slt, %18, %31 : vector<2x12x128xi32>
    %cst_7 = arith.constant 0.000000e+00 : f32
    %33 = vector.broadcast %cst_7 : f32 to vector<2x12x128xf32>
    %34 = arith.select %32, %16, %33 : vector<2x12x128xi1>, vector<2x12x128xf32>
    %cst_8 = arith.constant dense<0xFF800000> : vector<2x128xf32>
    %35 = vector.multi_reduction <maximumf>, %34, %cst_8 [1] : vector<2x12x128xf32> to vector<2x128xf32>
    %c0_9 = arith.constant 0 : index
    %c0_10 = arith.constant 0 : index
    %36 = vector.load %arg4[%c0_9, %c0_10] : memref<2x128xf32, #tpu.memory_space<vmem>>, vector<2x128xf32>
    tpu.vector_store %arg4[%c0_9, %c0_10], %35 {strides = array<i32>} : memref<2x128xf32, #tpu.memory_space<vmem>>, vector<2x128xf32>,
    return
  }
  func.func @transform_0(%arg0: i32) -> (i32, i32, i32) {
    %c0_i32 = arith.constant 0 : i32
    %c0_i32_0 = arith.constant 0 : i32
    %c0_i32_1 = arith.constant 0 : i32
    return %arg0, %c0_i32, %c0_i32_0 : i32, i32, i32
  }
  func.func @transform_1(%arg0: i32) -> (i32, i32) {
    %c0_i32 = arith.constant 0 : i32
    %c0_i32_0 = arith.constant 0 : i32
    %c0_i32_1 = arith.constant 0 : i32
    return %c0_i32, %c0_i32_0 : i32, i32
  }
  func.func @transform_2(%arg0: i32) -> (i32, i32) {
    %c0_i32 = arith.constant 0 : i32
    %c0_i32_0 = arith.constant 0 : i32
    %c0_i32_1 = arith.constant 0 : i32
    return %c0_i32, %c0_i32_0 : i32, i32
  }
  func.func @transform_3(%arg0: i32) -> (i32, i32) {
    %c0_i32 = arith.constant 0 : i32
    %c0_i32_0 = arith.constant 0 : i32
    return %arg0, %c0_i32 : i32, i32
  }
}

</mosaic_0001>

<llo_original>
// kernel: tpu_custom_call.1
$region0: #{tpu_custom_call.1}
  #allocation0 [shape = 'u32[]', space=smem, size = 0x4, offset = 0x4, fixed_abs, tag = 'smem constant byte address 0x4 - core index']
  #allocation1 [shape = 'u32[144,128]{1,0:T(1,128)}', space=vmem, size = 0x12000, scoped, tag = 'internal scratch']
  %s0 = inlined_call_operand.hbm [shape: f32[2,16,32], index: 0, kind: input, shape index: {}]
  %s1 = inlined_call_operand.hbm [shape: f32[160,128], index: 1, kind: input, shape index: {}]
  %s2 = inlined_call_operand.vmem [shape: f32[1,128], index: 2, kind: input, shape index: {}]
  %s3 = inlined_call_operand.hbm [shape: f32[2,128], index: 3, kind: output, shape index: {}]
  %s4 = sld [smem:[#allocation0]]
  $region30: #{tpu_custom_call.1} parent=0
    _
  %s6 = ssub.s32 1, %s4
  %s7 = scalar_select 0, %s6, %s4
  $region1: #{tpu_custom_call.1} parent=0
    #allocation2 [shape = 'u8[16384]{0}', space=vmem, size = 0x4000, scoped, tag = 'input window, operand 0, single buffered']
    #allocation3 [shape = 's32[1]{0}', space=sflag, size = 0x4, scoped, tag = 'scoped memory for tpu_custom_call.1']
    #allocation4 [shape = 's32[1]{0}', space=sflag, size = 0x4, scoped, tag = 'scoped memory for tpu_custom_call.1']
    #allocation5 [shape = 'u8[81920]{0}', space=vmem, size = 0x14000, scoped, tag = 'input window, operand 1, single buffered']
    #allocation6 [shape = 's32[1]{0}', space=sflag, size = 0x4, scoped, tag = 'scoped memory for tpu_custom_call.1']
    #allocation7 [shape = 'u8[1024]{0}', space=vmem, size = 0x400, scoped, tag = 'output window, operand 0, single buffered']
    %8 = vsyncpa [#allocation3], 0
    %9 = vsyncpa [#allocation6], 0
    %10 = vsyncpa [#allocation4], 0
    // Predicated region
    $region2: #{tpu_custom_call.1} parent=1 // pred_check
      _
    $region3: #{tpu_custom_call.1} parent=1 // pred_check_branch
      %12 = sbr.rel (0) target = $region5
    $region4: #{tpu_custom_call.1} parent=1 // pred_region
      %s14 = ssub.s32 512, 512
      %15 = vsyncadd [#allocation3], %s14
      %s16 = sshll.u32 [#allocation2], 4
      %s17 = int_to_ptr.vmem [resolvable:$true] %s16
      %22 = dma.hbm_to_vmem [thread:$0]  %s0, 512, %s17, [#allocation3], 128, 128, 8
    $region5: #{tpu_custom_call.1} parent=1 // pred_fallthru
      _
    // Predicated region
    $region6: #{tpu_custom_call.1} parent=1 // pred_check
      _
    $region7: #{tpu_custom_call.1} parent=1 // pred_check_branch
      %24 = sbr.rel (0) target = $region9
    $region8: #{tpu_custom_call.1} parent=1 // pred_region
      %s26 = ssub.s32 2560, 2560
      %27 = vsyncadd [#allocation6], %s26
      %s28 = sshll.u32 [#allocation5], 4
      %s29 = int_to_ptr.vmem [resolvable:$true] %s28
      %34 = dma.hbm_to_vmem [thread:$0]  %s1, 2560, %s29, [#allocation6], 128, 128, 8
    $region9: #{tpu_custom_call.1} parent=1 // pred_fallthru
      _
    // Predicated region
    $region10: #{tpu_custom_call.1} parent=1 // pred_check
      _
    $region11: #{tpu_custom_call.1} parent=1 // pred_check_branch
      %36 = sbr.rel (0) target = $region13
    $region12: #{tpu_custom_call.1} parent=1 // pred_region
      _
    $region13: #{tpu_custom_call.1} parent=1 // pred_fallthru
      _
    // Predicated region
    $region14: #{tpu_custom_call.1} parent=1 // pred_check
      _
    $region15: #{tpu_custom_call.1} parent=1 // pred_check_branch
      %38 = sbr.rel (0) target = $region17
    $region16: #{tpu_custom_call.1} parent=1 // pred_region
      %39 = dma.done [#allocation3], 512
    $region17: #{tpu_custom_call.1} parent=1 // pred_fallthru
      _
    // Predicated region
    $region18: #{tpu_custom_call.1} parent=1 // pred_check
      _
    $region19: #{tpu_custom_call.1} parent=1 // pred_check_branch
      %41 = sbr.rel (0) target = $region21
    $region20: #{tpu_custom_call.1} parent=1 // pred_region
      %42 = dma.done [#allocation6], 2560
    $region21: #{tpu_custom_call.1} parent=1 // pred_fallthru
      _
    %v43 = vld [vmem:[#allocation2] sm:$0xff]
    %v44 = vld [vmem:[#allocation2 + $0x8] sm:$0xff]
    %v45 = vld [vmem:[#allocation2 + $0x10] sm:$0xff]
    %v46 = vld [vmem:[#allocation2 + $0x18] sm:$0xff]
    %vm51 = vcmask 1046528
    %v52 = vrot.slane %v43, 1
    %v53 = vrot.slane %v44, 1
    %v54 = vsel %vm51, %v52, %v53
    %v55 = vrot.slane %v45, 1
    %v56 = vrot.slane %v46, 1
    %v57 = vsel %vm51, %v55, %v56
    %58 = vrot.lane.b32.xlu0 %v54, 32
    %v59 = vpop.permute.xlu0 %58
    %60 = vrot.lane.b32.xlu0 %v53, 32
    %v61 = vpop.permute.xlu0 %60
    %62 = vrot.lane.b32.xlu0 %v57, 32
    %v63 = vpop.permute.xlu0 %62
    %64 = vrot.lane.b32.xlu0 %v56, 32
    %v65 = vpop.permute.xlu0 %64
    %vm70 = vcmask 1045504
    %v71 = vrot.slane %v43, 2
    %v72 = vrot.slane %v44, 2
    %v73 = vsel %vm70, %v71, %v72
    %v74 = vrot.slane %v45, 2
    %v75 = vrot.slane %v46, 2
    %v76 = vsel %vm70, %v74, %v75
    %77 = vrot.lane.b32.xlu0 %v73, 64
    %v78 = vpop.permute.xlu0 %77
    %79 = vrot.lane.b32.xlu0 %v72, 64
    %v80 = vpop.permute.xlu0 %79
    %81 = vrot.lane.b32.xlu0 %v76, 64
    %v82 = vpop.permute.xlu0 %81
    %83 = vrot.lane.b32.xlu0 %v75, 64
    %v84 = vpop.permute.xlu0 %83
    %vm89 = vcmask 1044480
    %v90 = vrot.slane %v43, 3
    %v91 = vrot.slane %v44, 3
    %v92 = vsel %vm89, %v90, %v91
    %v93 = vrot.slane %v45, 3
    %v94 = vrot.slane %v46, 3
    %v95 = vsel %vm89, %v93, %v94
    %96 = vrot.lane.b32.xlu0 %v92, 96
    %v97 = vpop.permute.xlu0 %96
    %98 = vrot.lane.b32.xlu0 %v91, 96
    %v99 = vpop.permute.xlu0 %98
    %100 = vrot.lane.b32.xlu0 %v95, 96
    %v101 = vpop.permute.xlu0 %100
    %102 = vrot.lane.b32.xlu0 %v94, 96
    %v103 = vpop.permute.xlu0 %102
    %vm108 = vcmask 1043456
    %v109 = vrot.slane %v43, 4
    %v110 = vrot.slane %v44, 4
    %v111 = vsel %vm108, %v109, %v110
    %v112 = vrot.slane %v45, 4
    %v113 = vrot.slane %v46, 4
    %v114 = vsel %vm108, %v112, %v113
    %vm115 = vcmask 261120
    %v116 = vsel %vm115, %v43, %v59
    %v117 = vsel %vm115, %v44, %v61
    %v118 = vsel %vm115, %v45, %v63
    %v119 = vsel %vm115, %v46, %v65
    %vm120 = vcmask 523264
    %v121 = vsel %vm120, %v116, %v78
    %v122 = vsel %vm120, %v117, %v80
    %v123 = vsel %vm120, %v118, %v82
    %v124 = vsel %vm120, %v119, %v84
    %vm125 = vcmask 785408
    %v126 = vsel %vm125, %v121, %v97
    %v127 = vsel %vm125, %v122, %v99
    %v128 = vsel %vm125, %v123, %v101
    %v129 = vsel %vm125, %v124, %v103
    %v134 = vcombine.low %v126, %v111
    %v135 = vcombine.high %v126, %v111
    %v136 = vcombine.low %v127, %v110
    %v137 = vcombine.low %v128, %v114
    %v138 = vcombine.high %v128, %v114
    %v139 = vcombine.low %v129, %v113
    %v140 = vld [vmem:[#allocation5] sm:$0xff]
    %v141 = vld [vmem:[#allocation5 + $0x8] sm:$0xff]
    %v142 = vld [vmem:[#allocation5 + $0x10] sm:$0xff]
    %v143 = vld [vmem:[#allocation5 + $0x18] sm:$0xff]
    %v144 = vld [vmem:[#allocation5 + $0x20] sm:$0xff]
    %v145 = vld [vmem:[#allocation5 + $0x28] sm:$0xff]
    %v146 = vld [vmem:[#allocation5 + $0x30] sm:$0xff]
    %v147 = vld [vmem:[#allocation5 + $0x38] sm:$0xff]
    %v148 = vld [vmem:[#allocation5 + $0x40] sm:$0xff]
    %v149 = vld [vmem:[#allocation5 + $0x48] sm:$0xff]
    %v150 = vld [vmem:[#allocation5 + $0x50] sm:$0xff]
    %v151 = vld [vmem:[#allocation5 + $0x58] sm:$0xff]
    %v152 = vld [vmem:[#allocation5 + $0x60] sm:$0xff]
    %v153 = vld [vmem:[#allocation5 + $0x68] sm:$0xff]
    %v154 = vld [vmem:[#allocation5 + $0x70] sm:$0xff]
    %v155 = vld [vmem:[#allocation5 + $0x78] sm:$0xff]
    %v156 = vld [vmem:[#allocation5 + $0x80] sm:$0xff]
    %v157 = vld [vmem:[#allocation5 + $0x88] sm:$0xff]
    %v158 = vld [vmem:[#allocation5 + $0x90] sm:$0xff]
    %v159 = vld [vmem:[#allocation5 + $0x98] sm:$0xff]
    %v160 = vcombine.low %v134, %v135
    %v161 = vcombine.high %v134, %v135
    %v162 = vcombine.low %v136, %v137
    %v163 = vcombine.high %v136, %v137
    %v164 = vcombine.low %v138, %v139
    %v165 = vcombine.high %v138, %v139
    %v169 = vsel %vm115, %v161, 0
    %v171 = vsel %vm115, %v163, 0
    %v173 = vsel %vm115, %v165, 0
    %175 = vmatprep.subr.mxu0 0.0
    %176 = vmatpush1.msra.mxu0 %v140
    %177 = vmatprep.subr.mxu0 0.0
    %178 = vmatpush1.msra.mxu0 %v141
    %179 = vmatprep.subr.mxu0 0.0
    %180 = vmatpush1.msra.mxu0 %v142
    %181 = vmatprep.subr.mxu0 0.0
    %182 = vmatpush1.msra.mxu0 %v143
    %183 = vmatprep.subr.mxu0 0.0
    %184 = vmatpush1.msra.mxu0 %v144
    %185 = vmatprep.subr.mxu0 0.0
    %186 = vmatpush1.msra.mxu0 %v145
    %187 = vmatprep.subr.mxu0 0.0
    %188 = vmatpush1.msra.mxu0 %v146
    %189 = vmatprep.subr.mxu0 0.0
    %190 = vmatpush1.msra.mxu0 %v147
    %191 = vmatprep.subr.mxu0 0.0
    %192 = vmatpush1.msra.mxu0 %v148
    %193 = vmatprep.subr.mxu0 0.0
    %194 = vmatpush1.msra.mxu0 %v149
    %195 = vmatprep.subr.mxu0 0.0
    %196 = vmatpush1.msra.mxu0 %v150
    %197 = vmatprep.subr.mxu0 0.0
    %198 = vmatpush1.msra.mxu0 %v151
    %199 = vmatprep.subr.mxu0 0.0
    %200 = vmatpush1.msra.mxu0 %v152
    %201 = vmatprep.subr.mxu0 0.0
    %202 = vmatpush1.msra.mxu0 %v153
    %203 = vmatprep.subr.mxu0 0.0
    %204 = vmatpush1.msra.mxu0 %v154
    %205 = vmatprep.subr.mxu0 0.0
    %206 = vmatpush1.msra.mxu0 %v155
    %207 = vmatprep.subr.mxu0 0.0
    %208 = vmatpush1.msra.mxu0 %v156
    %209 = vmatprep.subr.mxu0 0.0
    %210 = vmatpush1.msra.mxu0 %v157
    %211 = vmatprep.subr.mxu0 0.0
    %212 = vmatpush1.msra.mxu0 %v158
    %213 = vmatprep.subr.mxu0 0.0
    %214 = vmatpush1.msra.mxu0 %v159
    %215 = vmatprep.subr.mxu0 0.0
    %216 = vmatpush1.msra.mxu0 0.0
    %217 = vmatprep.subr.mxu0 0.0
    %218 = vmatpush1.msra.mxu0 0.0
    %219 = vmatprep.subr.mxu0 0.0
    %220 = vmatpush1.msra.mxu0 0.0
    %221 = vmatprep.subr.mxu0 0.0
    %222 = vmatpush1.msra.mxu0 0.0
    %223 = vmatprep.subr.mxu0 0.0
    %224 = vmatpush1.msra.mxu0 0.0
    %225 = vmatprep.subr.mxu0 0.0
    %226 = vmatpush1.msra.mxu0 0.0
    %227 = vmatprep.subr.mxu0 0.0
    %228 = vmatpush1.msra.mxu0 0.0
    %229 = vmatprep.subr.mxu0 0.0
    %230 = vmatpush1.msra.mxu0 0.0
    %231 = vmatprep.subr.mxu0 0.0
    %232 = vmatpush1.msra.mxu0 0.0
    %233 = vmatprep.subr.mxu0 0.0
    %234 = vmatpush1.msra.mxu0 0.0
    %235 = vmatprep.subr.mxu0 0.0
    %236 = vmatpush1.msra.mxu0 0.0
    %237 = vmatprep.subr.mxu0 0.0
    %238 = vmatpush1.msra.mxu0 0.0
    %239 = vmatprep.mubr.f32.mxu0 %v169
    %240 = vmatmul.mubr.f32.gmra.mrb[0].mxu0 %v160
    %v241 = vpop.f32.mrb[0].mxu0
    %v242 = vadd.f32 0.0, %v241
    %v243 = vpop.f32.mrb[0].mxu0
    %244 = vmatprep.mubr.f32.mxu0 %v171
    %245 = vmatmul.mubr.f32.gmra.mrb[0].mxu0 %v162
    %v246 = vpop.f32.mrb[0].mxu0
    %v247 = vadd.f32 0.0, %v246
    %v248 = vpop.f32.mrb[0].mxu0
    %249 = vmatprep.mubr.f32.mxu0 %v173
    %250 = vmatmul.mubr.f32.gmra.mrb[0].mxu0 %v164
    %v251 = vpop.f32.mrb[0].mxu0
    %v252 = vadd.f32 0.0, %v251
    %v253 = vpop.f32.mrb[0].mxu0
    %254 = vdwg.mxu0
    %v258 = vcombine.high %v242, %v242
    %v259 = vcombine.high %v247, %v247
    %v260 = vcombine.high %v252, %v252
    %v264 = vld [vmem:[%s2] sm:$0x1]
    %v266 = vlaneseq
    %v267 = vshrl.u32 %v266, 7
    %v268 = vsub.s32 0, %v267
    %v269 = vrot.slane %v264, %v268
    %v271 = vcombine.high %v269, %v269
    %v273 = vadd.f32 %v242, %v269
    %v274 = vadd.f32 %v258, %v271
    %v275 = vadd.f32 %v247, %v269
    %v276 = vadd.f32 %v259, %v269
    %v277 = vadd.f32 %v252, %v271
    %v278 = vadd.f32 %v260, %v269
    %v279 = vmax.f32 %v273, 0.0
    %v280 = vmax.f32 %v274, 0.0
    %v281 = vmax.f32 %v275, 0.0
    %v282 = vmax.f32 %v276, 0.0
    %v283 = vmax.f32 %v277, 0.0
    %v284 = vmax.f32 %v278, 0.0
    %v285 = vlaneseq
    %v286 = vand.u32 %v285, 127
    %v287 = vlaneseq
    %v288 = vshrl.u32 %v287, 7
    %v289 = vadd.s32 %v288, 8
    %vm290 = vcmp.lt.s32.totalorder %v286, 16
    %vm291 = vcmp.lt.s32.totalorder %v286, 32
    %vm292 = vcmp.lt.s32.totalorder %v286, 48
    %v293 = vsel %vm292, 12, 0
    %v294 = vsel %vm291, 11, %v293
    %v295 = vsel %vm290, 10, %v294
    %vm296 = vcmp.lt.s32.totalorder %v288, %v295
    %vm297 = vcmp.lt.s32.totalorder %v289, %v295
    %v302 = vcombine.low %v279, %v280
    %v303 = vcombine.low %v282, %v283
    %v306 = vsel %vm296, %v302, 0.0
    %v307 = vsel %vm297, %v281, 0.0
    %v308 = vsel %vm296, %v303, 0.0
    %v309 = vsel %vm297, %v284, 0.0
    %v310 = vsel %vm108, %v307, -inf
    %v311 = vmax.f32 %v306, %v310
    %v312 = vrot.slane %v311, 4
    %v313 = vmax.f32 %v311, %v312
    %v314 = vrot.slane %v313, 2
    %v315 = vmax.f32 %v313, %v314
    %v316 = vrot.slane %v315, 1
    %v317 = vmax.f32 %v315, %v316
    %v318 = vsel %vm108, %v309, -inf
    %v319 = vmax.f32 %v308, %v318
    %v320 = vrot.slane %v319, 4
    %v321 = vmax.f32 %v319, %v320
    %v322 = vrot.slane %v321, 2
    %v323 = vmax.f32 %v321, %v322
    %v324 = vrot.slane %v323, 1
    %v325 = vmax.f32 %v323, %v324
    %vm328 = vcmask 1041409
    %v329 = vsel %vm328, %v325, %v317
    %331 = vst [vmem:[#allocation7] sm:$0x3] %v329
    // Predicated region
    $region22: #{tpu_custom_call.1} parent=1 // pred_check
      _
    $region23: #{tpu_custom_call.1} parent=1 // pred_check_branch
      %333 = sbr.rel (0) target = $region25
    $region24: #{tpu_custom_call.1} parent=1 // pred_region
      %s335 = ssub.s32 32, 32
      %336 = vsyncadd [#allocation4], %s335
      %s338 = sshll.u32 [#allocation7], 4
      %s339 = int_to_ptr.vmem [resolvable:$true] %s338
      %341 = dma.vmem_to_hbm [thread:$0]  %s339, 32, %s3, [#allocation4]
    $region25: #{tpu_custom_call.1} parent=1 // pred_fallthru
      _
    // Predicated region
    $region26: #{tpu_custom_call.1} parent=1 // pred_check
      _
    $region27: #{tpu_custom_call.1} parent=1 // pred_check_branch
      %343 = sbr.rel (0) target = $region29
    $region28: #{tpu_custom_call.1} parent=1 // pred_region
      %344 = dma.done [#allocation4], 32
    $region29: #{tpu_custom_call.1} parent=1 // pred_fallthru
      _
    %345 = vsyncpa [#allocation3], 1
    %346 = vsyncpa [#allocation6], 1
    %347 = vsyncpa [#allocation4], 1

</llo_original>
